<compile_context>
chip_gen: v6e
topology: v6e:2x2x1
jax: 0.10.0
libtpu: 0.0.40
codegen_flags: <defaults>
</compile_context>

<pallas_src>
import functools

import jax
import jax.numpy as jnp
from jax.experimental import pallas as pl
from jax.experimental.pallas import tpu as pltpu

LANE = 128        # lane width (last dim) for MXU-facing hidden/output dims
PACK = 16         # bf16 sublane packing granularity


def _cdiv(a, b):
    return (a + b - 1) // b


def _round_up(n, m):
    return _cdiv(n, m) * m


def _pad_to(a, shape):
    pads = [(0, t - s) for s, t in zip(a.shape, shape)]
    return jnp.pad(a, pads)


def mlp_kernel(x_ref, w1_ref, b1_ref, w2_ref, b2_ref, o_ref):
    # fc1 + relu: bf16 MXU matmul, f32 accumulation, f32 bias.
    h = jnp.dot(x_ref[...], w1_ref[...], preferred_element_type=jnp.float32)
    h = jnp.maximum(h + b1_ref[...], 0.0)

    # fc2: cast activations back to bf16 for the MXU, accumulate in f32.
    logits = jnp.dot(h.astype(jnp.bfloat16), w2_ref[...],
                     preferred_element_type=jnp.float32) + b2_ref[...]
    # Padded output lanes already hold -1e30 (baked into b2's padding on the
    # host), so no in-kernel iota/where mask is needed: exp() drives them to 0.

    # Numerically stable softmax; reciprocal on the EUP + one Newton refinement
    # (denom >= 1 after max-subtraction, so the approx path is safe).
    m = jnp.max(logits, axis=-1, keepdims=True)
    e = jnp.exp(logits - m)
    denom = jnp.sum(e, axis=-1, keepdims=True)
    inv = pl.reciprocal(denom, approx=True)
    inv = inv * (2.0 - denom * inv)          # Newton step -> ~f32 accuracy
    o_ref[...] = e * inv


@functools.partial(jax.jit, static_argnames=("block_b",))
def mlp_forward(x, w1, b1, w2, b2, *, block_b=512):
    """x: (B, in_dim); w1: (in, hid); b1: (hid,)|(1,hid); w2: (hid, out); b2: (out,)|(1,out)."""
    B, in_dim = x.shape
    hidden_dim = w1.shape[1]
    out_dim = w2.shape[1]

    # Padded dims.  x's lane dim only rounds to the bf16 packing granularity
    # (its block uses the full array dim, so the 128 rule does not apply);
    # hidden/output lanes are 128-dense for the MXU and unmasked stores.
    in_p = _round_up(in_dim, PACK)
    hid_p = _round_up(hidden_dim, LANE)
    out_p = _round_up(out_dim, LANE)

    # Batch tile: multiple of 16 (bf16 sublane packing); aim for >=2 balanced
    # grid steps so v7x's 2 TensorCores both get work on larger batches.
    TB = min(_round_up(block_b, PACK), _round_up(_cdiv(B, 2), PACK))
    TB = max(TB, PACK)
    B_p = _round_up(B, TB)
    nb = B_p // TB

    bf16, f32 = jnp.bfloat16, jnp.float32

    # bf16 MXU operands (fused cast+pad under jit); biases stay f32.
    x_p = _pad_to(x.astype(bf16), (B_p, in_p))
    w1_p = _pad_to(w1.astype(bf16), (in_p, hid_p))
    b1_p = _pad_to(jnp.reshape(b1, (1, -1)).astype(f32), (1, hid_p))
    w2_p = _pad_to(w2.astype(bf16), (hid_p, out_p))
    # Bake the padded-lane softmax mask into b2: padded w2 columns are zero, so
    # padded-lane logits == b2's pad value == -1e30 -> exp underflows to 0.
    b2_p = jnp.pad(jnp.reshape(b2, (1, -1)).astype(f32),
                   ((0, 0), (0, out_p - out_dim)), constant_values=-1e30)

    out_padded = pl.pallas_call(
        mlp_kernel,
        out_shape=jax.ShapeDtypeStruct((B_p, out_p), f32),
        grid_spec=pl.GridSpec(
            grid=(nb,),
            in_specs=[
                pl.BlockSpec((TB, in_p), lambda i: (i, 0)),      # x: batch-tiled
                pl.BlockSpec((in_p, hid_p), lambda i: (0, 0)),   # w1: VMEM-resident
                pl.BlockSpec((1, hid_p), lambda i: (0, 0)),      # b1
                pl.BlockSpec((hid_p, out_p), lambda i: (0, 0)),  # w2: VMEM-resident
                pl.BlockSpec((1, out_p), lambda i: (0, 0)),      # b2 (mask baked in)
            ],
            out_specs=pl.BlockSpec((TB, out_p), lambda i: (i, 0)),
        ),
        compiler_params=pltpu.CompilerParams(
            # Batch steps shard across v7x's 2 TensorCores; harmless on v5e/v6e.
            # No vmem_limit_bytes: actual footprint (~1-2 MiB) is far below the
            # default scoped-VMEM limit on every generation.
            dimension_semantics=("parallel",),
        ),
    )(x_p, w1_p, b1_p, w2_p, b2_p)

    # Strip batch / lane padding.
    # TODO(synk): for a mem-bound production path, let downstream consume the
    # padded (B_p, out_p) slab directly to avoid this extra pass over the output.
    return out_padded[:B, :out_dim]


if __name__ == "__main__":
    input_dim, hidden_dim, output_dim = 11, 20, 11
    batch = 8

    key = jax.random.PRNGKey(0)
    kx, kw1, kb1, kw2, kb2 = jax.random.split(key, 5)

    # Deterministic parameter init mirroring init.normal_(std=0.01).
    # Weights stored as (in_features, out_features): kernel computes x @ W + b,
    # equivalent to PyTorch's x @ W.T + b with W of shape (out, in).
    w1 = 0.01 * jax.random.normal(kw1, (input_dim, hidden_dim), dtype=jnp.float32)
    b1 = 0.01 * jax.random.normal(kb1, (hidden_dim,), dtype=jnp.float32)
    w2 = 0.01 * jax.random.normal(kw2, (hidden_dim, output_dim), dtype=jnp.float32)
    b2 = 0.01 * jax.random.normal(kb2, (output_dim,), dtype=jnp.float32)

    x = jax.random.normal(kx, (batch, input_dim), dtype=jnp.float32)

    out = mlp_forward(x, w1, b1, w2, b2)
    out = jax.block_until_ready(out)

    # Sanity check against a plain-JAX f32 reference (unpadded math).
    h_ref = jnp.maximum(x @ w1 + b1[None, :], 0.0)
    logits_ref = h_ref @ w2 + b2[None, :]
    ref = jax.nn.softmax(logits_ref, axis=-1)

    assert out.shape == (batch, output_dim)
    assert jnp.allclose(out, ref, atol=1e-4), "mismatch vs reference"
    assert jnp.allclose(jnp.sum(out, axis=-1), 1.0, atol=1e-4), "softmax rows must sum to 1"

    # TODO(synk): the PyTorch module's list<->tensor conversion and .tolist() output
    # formatting are host-side Python, not kernel work; only the tensor math is ported.
    print("KERNEL_OK")
</pallas_src>

<mosaic_0001>
module attributes {stable_mosaic.version = 11 : i64} {
  func.func @mlp_kernel(%arg0: i32, %arg1: memref<16x16xbf16, #tpu.memory_space<vmem>>, %arg2: memref<16x128xbf16, #tpu.memory_space<vmem>>, %arg3: memref<1x128xf32, #tpu.memory_space<vmem>>, %arg4: memref<128x128xbf16, #tpu.memory_space<vmem>>, %arg5: memref<1x128xf32, #tpu.memory_space<vmem>>, %arg6: memref<16x128xf32, #tpu.memory_space<vmem>>) attributes {dimension_semantics = [#tpu.dimension_semantics<parallel>], iteration_bounds = array<i64: 1>, scalar_prefetch = 0 : i64, scratch_operands = 0 : i64, tpu.core_type = #tpu.core_type<tc>, window_params = [{transform_indices = @transform_0, window_bounds = array<i64: 16, 16>}, {pipeline_mode = #tpu.pipeline_mode<synchronous>, transform_indices = @transform_1, window_bounds = array<i64: 16, 128>}, {pipeline_mode = #tpu.pipeline_mode<synchronous>, transform_indices = @transform_2, window_bounds = array<i64: 1, 128>}, {pipeline_mode = #tpu.pipeline_mode<synchronous>, transform_indices = @transform_3, window_bounds = array<i64: 128, 128>}, {pipeline_mode = #tpu.pipeline_mode<synchronous>, transform_indices = @transform_4, window_bounds = array<i64: 1, 128>}, {transform_indices = @transform_5, window_bounds = array<i64: 16, 128>}]} {
    %c0 = arith.constant 0 : index
    %c0_0 = arith.constant 0 : index
    %0 = vector.load %arg1[%c0, %c0_0] : memref<16x16xbf16, #tpu.memory_space<vmem>>, vector<16x16xbf16>
    %c0_1 = arith.constant 0 : index
    %c0_2 = arith.constant 0 : index
    %1 = vector.load %arg2[%c0_1, %c0_2] : memref<16x128xbf16, #tpu.memory_space<vmem>>, vector<16x128xbf16>
    %cst = arith.constant dense<0.000000e+00> : vector<16x128xf32>
    %2 = tpu.matmul %0, %1, %cst {dimension_numbers = #tpu.dot_dimension_numbers<[1], [0], [0], [1], [0, 0, 1, 1], [], []>} : vector<16x16xbf16>, vector<16x128xbf16>, vector<16x128xf32> -> vector<16x128xf32>
    %c0_3 = arith.constant 0 : index
    %c0_4 = arith.constant 0 : index
    %3 = vector.load %arg3[%c0_3, %c0_4] : memref<1x128xf32, #tpu.memory_space<vmem>>, vector<1x128xf32>
    %4 = vector.broadcast %3 : vector<1x128xf32> to vector<16x128xf32>
    %5 = arith.addf %2, %4 : vector<16x128xf32>
    %cst_5 = arith.constant 0.000000e+00 : f32
    %6 = vector.broadcast %cst_5 : f32 to vector<16x128xf32>
    %7 = arith.maximumf %5, %6 : vector<16x128xf32>
    %8 = arith.truncf %7 : vector<16x128xf32> to vector<16x128xbf16>
    %c0_6 = arith.constant 0 : index
    %c0_7 = arith.constant 0 : index
    %9 = vector.load %arg4[%c0_6, %c0_7] : memref<128x128xbf16, #tpu.memory_space<vmem>>, vector<128x128xbf16>
    %cst_8 = arith.constant dense<0.000000e+00> : vector<16x128xf32>
    %10 = tpu.matmul %8, %9, %cst_8 {dimension_numbers = #tpu.dot_dimension_numbers<[1], [0], [0], [1], [0, 0, 1, 1], [], []>} : vector<16x128xbf16>, vector<128x128xbf16>, vector<16x128xf32> -> vector<16x128xf32>
    %c0_9 = arith.constant 0 : index
    %c0_10 = arith.constant 0 : index
    %11 = vector.load %arg5[%c0_9, %c0_10] : memref<1x128xf32, #tpu.memory_space<vmem>>, vector<1x128xf32>
    %12 = vector.broadcast %11 : vector<1x128xf32> to vector<16x128xf32>
    %13 = arith.addf %10, %12 : vector<16x128xf32>
    %cst_11 = arith.constant dense<0xFF800000> : vector<16xf32>
    %14 = vector.multi_reduction <maximumf>, %13, %cst_11 [1] : vector<16x128xf32> to vector<16xf32>
    %15 = vector.shape_cast %14 : vector<16xf32> to vector<16x1xf32>
    %16 = vector.broadcast %15 : vector<16x1xf32> to vector<16x128xf32>
    %17 = arith.subf %13, %16 : vector<16x128xf32>
    %18 = math.exp %17 : vector<16x128xf32>
    %cst_12 = arith.constant dense<0.000000e+00> : vector<16xf32>
    %19 = vector.multi_reduction <add>, %18, %cst_12 [1] : vector<16x128xf32> to vector<16xf32>
    %20 = vector.shape_cast %19 : vector<16xf32> to vector<16x1xf32>
    %21 = tpu.reciprocal %20 {approx = true} : vector<16x1xf32> -> vector<16x1xf32>
    %22 = arith.mulf %20, %21 : vector<16x1xf32>
    %cst_13 = arith.constant 2.000000e+00 : f32
    %23 = vector.broadcast %cst_13 : f32 to vector<16x1xf32>
    %24 = arith.subf %23, %22 : vector<16x1xf32>
    %25 = arith.mulf %21, %24 : vector<16x1xf32>
    %26 = vector.broadcast %25 : vector<16x1xf32> to vector<16x128xf32>
    %27 = arith.mulf %18, %26 : vector<16x128xf32>
    %c0_14 = arith.constant 0 : index
    %c0_15 = arith.constant 0 : index
    %28 = vector.load %arg6[%c0_14, %c0_15] : memref<16x128xf32, #tpu.memory_space<vmem>>, vector<16x128xf32>
    tpu.vector_store %arg6[%c0_14, %c0_15], %27 {strides = array<i32>} : memref<16x128xf32, #tpu.memory_space<vmem>>, vector<16x128xf32>,
    return
  }
  func.func @transform_0(%arg0: i32) -> (i32, i32) {
    %c0_i32 = arith.constant 0 : i32
    %c0_i32_0 = arith.constant 0 : i32
    return %arg0, %c0_i32 : i32, i32
  }
  func.func @transform_1(%arg0: i32) -> (i32, i32) {
    %c0_i32 = arith.constant 0 : i32
    %c0_i32_0 = arith.constant 0 : i32
    %c0_i32_1 = arith.constant 0 : i32
    return %c0_i32, %c0_i32_0 : i32, i32
  }
  func.func @transform_2(%arg0: i32) -> (i32, i32) {
    %c0_i32 = arith.constant 0 : i32
    %c0_i32_0 = arith.constant 0 : i32
    %c0_i32_1 = arith.constant 0 : i32
    return %c0_i32, %c0_i32_0 : i32, i32
  }
  func.func @transform_3(%arg0: i32) -> (i32, i32) {
    %c0_i32 = arith.constant 0 : i32
    %c0_i32_0 = arith.constant 0 : i32
    %c0_i32_1 = arith.constant 0 : i32
    return %c0_i32, %c0_i32_0 : i32, i32
  }
  func.func @transform_4(%arg0: i32) -> (i32, i32) {
    %c0_i32 = arith.constant 0 : i32
    %c0_i32_0 = arith.constant 0 : i32
    %c0_i32_1 = arith.constant 0 : i32
    return %c0_i32, %c0_i32_0 : i32, i32
  }
  func.func @transform_5(%arg0: i32) -> (i32, i32) {
    %c0_i32 = arith.constant 0 : i32
    %c0_i32_0 = arith.constant 0 : i32
    return %arg0, %c0_i32 : i32, i32
  }
}

</mosaic_0001>

<llo_original>
// kernel: mlp_forward.1
$region0: #{mlp_forward.1}
  #allocation0 [shape = 'u32[]', space=smem, size = 0x4, offset = 0x4, fixed_abs, tag = 'smem constant byte address 0x4 - core index']
  #allocation1 [shape = 'u32[144,128]{1,0:T(1,128)}', space=vmem, size = 0x12000, scoped, tag = 'internal scratch']
  %s0 = inlined_call_operand.vmem [shape: bf16[16,16], index: 0, kind: input, shape index: {}]
  %s1 = inlined_call_operand.vmem [shape: bf16[16,128], index: 1, kind: input, shape index: {}]
  %s2 = inlined_call_operand.vmem [shape: f32[1,128], index: 2, kind: input, shape index: {}]
  %s3 = inlined_call_operand.vmem [shape: bf16[128,128], index: 3, kind: input, shape index: {}]
  %s4 = inlined_call_operand.vmem [shape: f32[1,128], index: 4, kind: input, shape index: {}]
  %s5 = inlined_call_operand.vmem [shape: f32[16,128], index: 5, kind: output, shape index: {}]
  %s6 = sld [smem:[#allocation0]]
  $region30: #{mlp_forward.1} parent=0
    _
  %s8 = ssub.s32 1, %s6
  %s9 = scalar_select 0, %s8, %s6
  // Predicated region
  $region2: #{mlp_forward.1} parent=0 // pred_check
    _
  $region3: #{mlp_forward.1} parent=0 // pred_check_branch
    %11 = sbr.rel (0) target = $region5
  $region4: #{mlp_forward.1} parent=0 // pred_region
    _
  $region5: #{mlp_forward.1} parent=0 // pred_fallthru
    _
  // Predicated region
  $region6: #{mlp_forward.1} parent=0 // pred_check
    _
  $region7: #{mlp_forward.1} parent=0 // pred_check_branch
    %13 = sbr.rel (0) target = $region9
  $region8: #{mlp_forward.1} parent=0 // pred_region
    _
  $region9: #{mlp_forward.1} parent=0 // pred_fallthru
    _
  // Predicated region
  $region10: #{mlp_forward.1} parent=0 // pred_check
    _
  $region11: #{mlp_forward.1} parent=0 // pred_check_branch
    %15 = sbr.rel (0) target = $region13
  $region12: #{mlp_forward.1} parent=0 // pred_region
    _
  $region13: #{mlp_forward.1} parent=0 // pred_fallthru
    _
  // Predicated region
  $region14: #{mlp_forward.1} parent=0 // pred_check
    _
  $region15: #{mlp_forward.1} parent=0 // pred_check_branch
    %17 = sbr.rel (0) target = $region17
  $region16: #{mlp_forward.1} parent=0 // pred_region
    _
  $region17: #{mlp_forward.1} parent=0 // pred_fallthru
    _
  // Predicated region
  $region18: #{mlp_forward.1} parent=0 // pred_check
    _
  $region19: #{mlp_forward.1} parent=0 // pred_check_branch
    %19 = sbr.rel (0) target = $region21
  $region20: #{mlp_forward.1} parent=0 // pred_region
    _
  $region21: #{mlp_forward.1} parent=0 // pred_fallthru
    _
  %v21 = vld [vmem:[%s0] sm:$0xf]
  %v22 = vld [vmem:[%s0 + $0x4] sm:$0xf]
  %v23 = vld [vmem:[%s1] sm:$0xf]
  %v24 = vld [vmem:[%s1 + $0x4] sm:$0xf]
  %v25 = vld [vmem:[%s2] sm:$0x1]
  %v27 = vlaneseq
  %v28 = vshrl.u32 %v27, 7
  %v29 = vsub.s32 0, %v28
  %v30 = vrot.slane %v25, %v29
  %v34 = vunpack.c.l.b16 %v21
  %v35 = vunpack.c.l.b16 %v22
  %v36 = vpack.c.b16 %v35, %v34
  %v39 = vunpack.c.l.b16 %v23
  %v40 = vunpack.c.l.b16 %v24
  %v41 = vpack.c.b16 %v40, %v39
  %vm43 = vcmask 130048
  %v45 = vsel %vm43, %v36, 0
  %47 = vmatprep.subr.bf16.mxu0 0
  %48 = vmatpush1.bf16.msra.mxu0 0
  %49 = vmatprep.subr.bf16.mxu0 0
  %50 = vmatpush1.bf16.msra.mxu0 0
  %51 = vmatprep.subr.bf16.mxu0 0
  %52 = vmatpush1.bf16.msra.mxu0 0
  %53 = vmatprep.subr.bf16.mxu0 0
  %54 = vmatpush1.bf16.msra.mxu0 0
  %55 = vmatprep.subr.bf16.mxu0 0
  %56 = vmatpush1.bf16.msra.mxu0 0
  %57 = vmatprep.subr.bf16.mxu0 0
  %58 = vmatpush1.bf16.msra.mxu0 0
  %59 = vmatprep.subr.bf16.mxu0 0
  %60 = vmatpush1.bf16.msra.mxu0 0
  %61 = vmatprep.subr.bf16.mxu0 0
  %62 = vmatpush1.bf16.msra.mxu0 %v41
  %63 = vmatprep.subr.bf16.mxu0 0
  %64 = vmatpush2.bf16.msra.mxu0 0
  %65 = vmatprep.subr.bf16.mxu0 0
  %66 = vmatpush2.bf16.msra.mxu0 0
  %67 = vmatprep.subr.bf16.mxu0 0
  %68 = vmatpush2.bf16.msra.mxu0 0
  %69 = vmatprep.subr.bf16.mxu0 0
  %70 = vmatpush2.bf16.msra.mxu0 0
  %71 = vmatprep.subr.bf16.mxu0 0
  %72 = vmatpush2.bf16.msra.mxu0 0
  %73 = vmatprep.subr.bf16.mxu0 0
  %74 = vmatpush2.bf16.msra.mxu0 0
  %75 = vmatprep.subr.bf16.mxu0 0
  %76 = vmatpush2.bf16.msra.mxu0 0
  %77 = vmatprep.subr.bf16.mxu0 0
  %78 = vmatpush2.bf16.msra.mxu0 0
  %79 = vmatprep.mubr.bf16.mxu0 0
  %80 = vmatmul.mubr.bf16.gmra.mxu0 %v45
  %v81 = vpop.f32.mrf.mxu0
  %v82 = vadd.f32 %v30, %v81
  %v83 = vpop.f32.mrf.mxu0
  %v84 = vpop.f32.mrf.mxu0
  %v85 = vadd.f32 %v30, %v84
  %v86 = vpop.f32.mrf.mxu0
  %87 = vdwg.mxu0
  %v88 = vmax.f32 %v82, 0.0
  %v89 = vmax.f32 %v85, 0.0
  %v90 = vpack.c.bf16 %v89, %v88
  %v91 = vld [vmem:[%s3] sm:$0xf]
  %v92 = vld [vmem:[%s3 + $0x4] sm:$0xf]
  %v93 = vld [vmem:[%s3 + $0x8] sm:$0xf]
  %v94 = vld [vmem:[%s3 + $0xc] sm:$0xf]
  %v95 = vld [vmem:[%s3 + $0x10] sm:$0xf]
  %v96 = vld [vmem:[%s3 + $0x14] sm:$0xf]
  %v97 = vld [vmem:[%s3 + $0x18] sm:$0xf]
  %v98 = vld [vmem:[%s3 + $0x1c] sm:$0xf]
  %v99 = vld [vmem:[%s3 + $0x20] sm:$0xf]
  %v100 = vld [vmem:[%s3 + $0x24] sm:$0xf]
  %v101 = vld [vmem:[%s3 + $0x28] sm:$0xf]
  %v102 = vld [vmem:[%s3 + $0x2c] sm:$0xf]
  %v103 = vld [vmem:[%s3 + $0x30] sm:$0xf]
  %v104 = vld [vmem:[%s3 + $0x34] sm:$0xf]
  %v105 = vld [vmem:[%s3 + $0x38] sm:$0xf]
  %v106 = vld [vmem:[%s3 + $0x3c] sm:$0xf]
  %v107 = vld [vmem:[%s4] sm:$0x1]
  %v109 = vlaneseq
  %v110 = vshrl.u32 %v109, 7
  %v111 = vsub.s32 0, %v110
  %v112 = vrot.slane %v107, %v111
  %v130 = vunpack.c.l.b16 %v91
  %v131 = vunpack.c.l.b16 %v92
  %v132 = vunpack.c.l.b16 %v93
  %v133 = vunpack.c.l.b16 %v94
  %v134 = vunpack.c.l.b16 %v95
  %v135 = vunpack.c.l.b16 %v96
  %v136 = vunpack.c.l.b16 %v97
  %v137 = vunpack.c.l.b16 %v98
  %v138 = vunpack.c.l.b16 %v99
  %v139 = vunpack.c.l.b16 %v100
  %v140 = vunpack.c.l.b16 %v101
  %v141 = vunpack.c.l.b16 %v102
  %v142 = vunpack.c.l.b16 %v103
  %v143 = vunpack.c.l.b16 %v104
  %v144 = vunpack.c.l.b16 %v105
  %v145 = vunpack.c.l.b16 %v106
  %v146 = vpack.c.b16 %v131, %v130
  %v147 = vpack.c.b16 %v133, %v132
  %v148 = vpack.c.b16 %v135, %v134
  %v149 = vpack.c.b16 %v137, %v136
  %v150 = vpack.c.b16 %v139, %v138
  %v151 = vpack.c.b16 %v141, %v140
  %v152 = vpack.c.b16 %v143, %v142
  %v153 = vpack.c.b16 %v145, %v144
  %162 = vmatprep.subr.bf16.mxu0 0
  %163 = vmatpush1.bf16.msra.mxu0 %v153
  %164 = vmatprep.subr.bf16.mxu0 0
  %165 = vmatpush1.bf16.msra.mxu0 %v152
  %166 = vmatprep.subr.bf16.mxu0 0
  %167 = vmatpush1.bf16.msra.mxu0 %v151
  %168 = vmatprep.subr.bf16.mxu0 0
  %169 = vmatpush1.bf16.msra.mxu0 %v150
  %170 = vmatprep.subr.bf16.mxu0 0
  %171 = vmatpush1.bf16.msra.mxu0 %v149
  %172 = vmatprep.subr.bf16.mxu0 0
  %173 = vmatpush1.bf16.msra.mxu0 %v148
  %174 = vmatprep.subr.bf16.mxu0 0
  %175 = vmatpush1.bf16.msra.mxu0 %v147
  %176 = vmatprep.subr.bf16.mxu0 0
  %177 = vmatpush1.bf16.msra.mxu0 %v146
  %178 = vmatprep.subr.bf16.mxu0 0
  %179 = vmatpush2.bf16.msra.mxu0 0
  %180 = vmatprep.subr.bf16.mxu0 0
  %181 = vmatpush2.bf16.msra.mxu0 0
  %182 = vmatprep.subr.bf16.mxu0 0
  %183 = vmatpush2.bf16.msra.mxu0 0
  %184 = vmatprep.subr.bf16.mxu0 0
  %185 = vmatpush2.bf16.msra.mxu0 0
  %186 = vmatprep.subr.bf16.mxu0 0
  %187 = vmatpush2.bf16.msra.mxu0 0
  %188 = vmatprep.subr.bf16.mxu0 0
  %189 = vmatpush2.bf16.msra.mxu0 0
  %190 = vmatprep.subr.bf16.mxu0 0
  %191 = vmatpush2.bf16.msra.mxu0 0
  %192 = vmatprep.subr.bf16.mxu0 0
  %193 = vmatpush2.bf16.msra.mxu0 0
  %194 = vmatprep.mubr.bf16.mxu0 0
  %195 = vmatmul.mubr.bf16.gmra.mxu0 %v90
  %v196 = vpop.f32.mrf.mxu0
  %v197 = vadd.f32 %v112, %v196
  %v198 = vpop.f32.mrf.mxu0
  %v199 = vpop.f32.mrf.mxu0
  %v200 = vadd.f32 %v112, %v199
  %v201 = vpop.f32.mrf.mxu0
  %202 = vdwg.mxu0
  %203 = vmax.xlane.f32.xlu0 %v197
  %v204 = vpop.xlane.xlu0 %203
  %205 = vmax.xlane.f32.xlu0 %v200
  %v206 = vpop.xlane.xlu0 %205
  %v207 = vsub.f32 %v197, %v204
  %v208 = vsub.f32 %v200, %v206
  %v209 = vmul.f32 %v207, 1.442695
  %v210 = vpow.pop %v209
  %v211 = vmul.f32 %v208, 1.442695
  %v212 = vpow.pop %v211
  %213 = vadd.xlane.f32.xlu0 %v210
  %v214 = vpop.xlane.xlu0 %213
  %215 = vadd.xlane.f32.xlu0 %v212
  %v216 = vpop.xlane.xlu0 %215
  %v217 = vrcp.pop %v214
  %v218 = vrcp.pop %v216
  %v219 = vmul.f32 %v214, %v217
  %v220 = vmul.f32 %v216, %v218
  %v221 = vsub.f32 2.0, %v219
  %v222 = vsub.f32 2.0, %v220
  %v223 = vmul.f32 %v217, %v221
  %v224 = vmul.f32 %v218, %v222
  %v225 = vmul.f32 %v210, %v223
  %v226 = vmul.f32 %v212, %v224
  %227 = vst [vmem:[%s5] sm:$0xff] %v225
  %228 = vst [vmem:[%s5 + $0x8] sm:$0xff] %v226
  // Predicated region
  $region22: #{mlp_forward.1} parent=0 // pred_check
    _
  $region23: #{mlp_forward.1} parent=0 // pred_check_branch
    %230 = sbr.rel (0) target = $region25
  $region24: #{mlp_forward.1} parent=0 // pred_region
    _
  $region25: #{mlp_forward.1} parent=0 // pred_fallthru
    _
  // Predicated region
  $region26: #{mlp_forward.1} parent=0 // pred_check
    _
  $region27: #{mlp_forward.1} parent=0 // pred_check_branch
    %232 = sbr.rel (0) target = $region29
  $region28: #{mlp_forward.1} parent=0 // pred_region
    _
  $region29: #{mlp_forward.1} parent=0 // pred_fallthru
    _

</llo_original>
